<compile_context>
chip_gen: v5e
topology: v5e:2x2
jax: 0.10.0
libtpu: 0.0.40
codegen_flags: <defaults>
</compile_context>

<pallas_src>
import jax
import jax.numpy as jnp
from jax.experimental import pallas as pl
from jax.experimental.pallas import tpu as pltpu


# ------------------------------ Pallas kernel --------------------------------

def _deepmind_fused_kernel(x_ref, t1_ref, b1_ref, t2_ref, b2_ref, t3_ref,
                           b3_ref, o_ref):
    """relu(relu(relu(x@T1+b1)@T2+b2)@T3+b3) for one batch tile, all in VMEM.

    Matmul operands are bf16 (MXU-native), bias-add/ReLU and accumulation f32.
    """
    h = x_ref[...].astype(jnp.bfloat16)                       # cast in VMEM
    h = jnp.dot(h, t1_ref[...], preferred_element_type=jnp.float32) + b1_ref[...]
    h = jnp.maximum(h, 0.0).astype(jnp.bfloat16)
    h = jnp.dot(h, t2_ref[...], preferred_element_type=jnp.float32) + b2_ref[...]
    h = jnp.maximum(h, 0.0).astype(jnp.bfloat16)
    h = jnp.dot(h, t3_ref[...], preferred_element_type=jnp.float32) + b3_ref[...]
    o_ref[...] = jnp.maximum(h, 0.0).astype(o_ref.dtype)


# --------------------------- weight preparation -------------------------------

def _round_up(n, m):
    return ((n + m - 1) // m) * m


def _conv_toeplitz(w_oihw, in_hw, stride, out_order, n_rows, n_cols):
    """Dense matrix T with x_flat @ T == 3x3 VALID conv (given stride).

    Row index  = (h_in * W + w_in) * IC + ic             (NHWC-flattened input)
    Col index  = (oh * OW + ow) * OC + oc                 if out_order == "hwc"
               =  oc * (OH * OW) + oh * OW + ow           if out_order == "chw"
    """
    OC, IC, KH, KW = w_oihw.shape
    H, W = in_hw
    OH = (H - KH) // stride + 1
    OW = (W - KW) // stride + 1
    ohg, owg, ocg, khg, kwg, icg = jnp.meshgrid(
        jnp.arange(OH), jnp.arange(OW), jnp.arange(OC),
        jnp.arange(KH), jnp.arange(KW), jnp.arange(IC), indexing="ij")
    rows = ((ohg * stride + khg) * W + (owg * stride + kwg)) * IC + icg
    if out_order == "hwc":
        cols = (ohg * OW + owg) * OC + ocg
    else:  # "chw" — PyTorch view(-1, C*H*W) order
        cols = ocg * (OH * OW) + ohg * OW + owg
    vals = w_oihw[ocg, icg, khg, kwg].astype(jnp.float32)
    t = jnp.zeros((n_rows, n_cols), jnp.float32)
    return t.at[rows.ravel(), cols.ravel()].set(vals.ravel())


def prep_deepmind_params(params):
    """One-time conversion of PyTorch-layout conv params to fused matmul operands."""
    (w1, b1), (w2, b2), (w3, b3) = params
    K1 = 17 * 17            # 289 : flattened (C=1) input columns — no padding
    N1 = 8 * 8 * 4          # 256 : conv1 output (hwc order)
    N2 = 6 * 6 * 8          # 288 : conv2 output (hwc order)
    N3 = 4 * 4 * 16         # 256 : final features, CHW flatten order
    t1 = _conv_toeplitz(w1, (17, 17), 2, "hwc", K1, N1).astype(jnp.bfloat16)
    t2 = _conv_toeplitz(w2, (8, 8), 1, "hwc", N1, N2).astype(jnp.bfloat16)
    t3 = _conv_toeplitz(w3, (6, 6), 1, "chw", N2, N3).astype(jnp.bfloat16)
    b1v = jnp.tile(b1.astype(jnp.float32), 8 * 8).reshape(1, N1)   # bias[c] per (h,w,c)
    b2v = jnp.tile(b2.astype(jnp.float32), 6 * 6).reshape(1, N2)
    b3v = jnp.repeat(b3.astype(jnp.float32), 4 * 4).reshape(1, N3)  # bias[c] per (c,h,w)
    return t1, b1v, t2, b2v, t3, b3v


# ------------------------------- forward pass ---------------------------------

def deepmind_forward(x_nchw, prepped, *, block_b=2048, out_dtype=jnp.float32):
    """PyTorch-equivalent forward: NCHW input (B,1,17,17) -> (B, 256) features."""
    t1, b1v, t2, b2v, t3, b3v = prepped
    B = x_nchw.shape[0]
    K1 = t1.shape[0]        # 289
    N1 = t1.shape[1]        # 256
    N2 = t2.shape[1]        # 288
    N3 = t3.shape[1]        # 256

    # NCHW flatten of the raw (B,1,17,17) input is pure metadata (C=1): no pad,
    # no dtype copy, no extra HBM pass.  The kernel casts the tile to bf16.
    x_flat = x_nchw.reshape(B, K1)

    # Batch tile: keep >=2 grid steps whenever possible so
    # dimension_semantics=("parallel",) shards across v7x's two TensorCores;
    # tile is a multiple of 8 (sublane) unless the whole batch is one block.
    half = _round_up(pl.cdiv(B, 2), 8)
    tm = min(block_b, half)
    if tm >= B:
        tm = B
    grid = (pl.cdiv(B, tm),)

    # Explicit scoped-VMEM budget: double-buffered input/output tiles and
    # (tiny, bf16) weights, plus room for the in-kernel f32/bf16 intermediates.
    # ~26 MiB at the default block_b=2048 — well inside v7x's 64 MiB physical.
    out_itemsize = jnp.dtype(out_dtype).itemsize
    in_tile = tm * _round_up(K1, 128) * 4
    out_tile = tm * _round_up(N3, 128) * out_itemsize
    wbytes = sum(int(a.size) * a.dtype.itemsize
                 for a in (t1, b1v, t2, b2v, t3, b3v))
    inter = tm * (_round_up(N1, 128) + _round_up(N2, 128) + _round_up(N3, 128)) * 6
    vmem_limit = max(32 << 20, 2 * (in_tile + out_tile + wbytes) + inter + (4 << 20))

    flops = 2 * B * (K1 * N1 + N1 * N2 + N2 * N3)
    bytes_accessed = B * (K1 * x_flat.dtype.itemsize + N3 * out_itemsize) + wbytes

    def _whole(shape):                 # weights/biases resident, fetched once
        return pl.BlockSpec(shape, lambda i: (0, 0))

    return pl.pallas_call(
        _deepmind_fused_kernel,
        out_shape=jax.ShapeDtypeStruct((B, N3), out_dtype),
        grid=grid,
        in_specs=[
            pl.BlockSpec((tm, K1), lambda i: (i, 0)),        # batch tile of input
            _whole(t1.shape), _whole(b1v.shape),
            _whole(t2.shape), _whole(b2v.shape),
            _whole(t3.shape), _whole(b3v.shape),
        ],
        out_specs=pl.BlockSpec((tm, N3), lambda i: (i, 0)),  # lane-dense (., 256)
        compiler_params=pltpu.CompilerParams(
            dimension_semantics=("parallel",),               # v7x: 2-TC batch sharding
            vmem_limit_bytes=int(vmem_limit)),
        cost_estimate=pl.CostEstimate(
            flops=int(flops), transcendentals=0,
            bytes_accessed=int(bytes_accessed)),
    )(x_flat, t1, b1v, t2, b2v, t3, b3v)


# --------------------------- init & pure-JAX reference ------------------------

def orthogonal_init(key, shape, gain):
    """Deterministic orthogonal init (QR of a Gaussian), PyTorch-style flattening."""
    rows = shape[0]
    cols = shape[1] * shape[2] * shape[3]
    a = jax.random.normal(key, (max(rows, cols), min(rows, cols)), jnp.float32)
    q, r = jnp.linalg.qr(a)
    d = jnp.sign(jnp.diag(r))
    d = jnp.where(d == 0, 1.0, d)      # guard the measure-zero sign==0 case
    q = q * d
    if rows < cols:
        q = q.T
    return (gain * q[:rows, :cols]).reshape(shape).astype(jnp.float32)


def init_deepmind_params(key):
    gain = 2.0 ** 0.5                  # nn.init.calculate_gain('relu')
    k1, k2, k3 = jax.random.split(key, 3)
    w1 = orthogonal_init(k1, (4, 1, 3, 3), gain)
    w2 = orthogonal_init(k2, (8, 4, 3, 3), gain)
    w3 = orthogonal_init(k3, (16, 8, 3, 3), gain)
    b1 = jnp.zeros((4,), jnp.float32)
    b2 = jnp.zeros((8,), jnp.float32)
    b3 = jnp.zeros((16,), jnp.float32)
    return (w1, b1), (w2, b2), (w3, b3)


def deepmind_reference(x_nchw, params):
    """Plain-XLA reference used only for the correctness check in __main__."""
    (w1, b1), (w2, b2), (w3, b3) = params

    def conv(x, w, b, s):
        y = jax.lax.conv_general_dilated(
            x, w, window_strides=(s, s), padding="VALID",
            dimension_numbers=("NCHW", "OIHW", "NCHW"),
            precision=jax.lax.Precision.HIGHEST)
        return jax.nn.relu(y + b[None, :, None, None])

    x = conv(x_nchw, w1, b1, 2)
    x = conv(x, w2, b2, 1)
    x = conv(x, w3, b3, 1)
    return x.reshape(x.shape[0], -1)   # (C, H, W) flatten, like x.view(-1, 256)


# ------------------------------------ main ------------------------------------

if __name__ == "__main__":
    key = jax.random.PRNGKey(0)
    k_param, k_input = jax.random.split(key)

    params = init_deepmind_params(k_param)
    prepped = prep_deepmind_params(params)   # one-time weight transform (cached)

    # B=2, C=1, 17x17 input -> conv stack -> 4x4x16 = 256 features
    # (consistent with the module's x.view(-1, 16*4*4)).
    x = jax.random.normal(k_input, (2, 1, 17, 17), jnp.float32)

    fwd = jax.jit(lambda xx: deepmind_forward(xx, prepped))
    out = jax.block_until_ready(fwd(x))

    assert out.shape == (2, 256), out.shape
    assert out.dtype == jnp.float32

    # Sanity check against a plain-XLA conv reference (tolerance covers bf16
    # MXU operands with f32 accumulation).
    ref = deepmind_reference(x, params)
    assert jnp.allclose(out, ref, rtol=5e-2, atol=5e-2), \
        float(jnp.max(jnp.abs(out - ref)))

    print("KERNEL_OK")
</pallas_src>

<mosaic_0001>
module attributes {stable_mosaic.version = 11 : i64} {
  func.func @_deepmind_fused_kernel(%arg0: i32, %arg1: memref<2x289xf32, #tpu.memory_space<vmem>>, %arg2: memref<289x256xbf16, #tpu.memory_space<vmem>>, %arg3: memref<1x256xf32, #tpu.memory_space<vmem>>, %arg4: memref<256x288xbf16, #tpu.memory_space<vmem>>, %arg5: memref<1x288xf32, #tpu.memory_space<vmem>>, %arg6: memref<288x256xbf16, #tpu.memory_space<vmem>>, %arg7: memref<1x256xf32, #tpu.memory_space<vmem>>, %arg8: memref<2x256xf32, #tpu.memory_space<vmem>>) attributes {dimension_semantics = [#tpu.dimension_semantics<parallel>], iteration_bounds = array<i64: 1>, scalar_prefetch = 0 : i64, scratch_operands = 0 : i64, tpu.core_type = #tpu.core_type<tc>, window_params = [{transform_indices = @transform_0, window_bounds = array<i64: 2, 289>}, {pipeline_mode = #tpu.pipeline_mode<synchronous>, transform_indices = @transform_1, window_bounds = array<i64: 289, 256>}, {pipeline_mode = #tpu.pipeline_mode<synchronous>, transform_indices = @transform_2, window_bounds = array<i64: 1, 256>}, {pipeline_mode = #tpu.pipeline_mode<synchronous>, transform_indices = @transform_3, window_bounds = array<i64: 256, 288>}, {pipeline_mode = #tpu.pipeline_mode<synchronous>, transform_indices = @transform_4, window_bounds = array<i64: 1, 288>}, {pipeline_mode = #tpu.pipeline_mode<synchronous>, transform_indices = @transform_5, window_bounds = array<i64: 288, 256>}, {pipeline_mode = #tpu.pipeline_mode<synchronous>, transform_indices = @transform_6, window_bounds = array<i64: 1, 256>}, {transform_indices = @transform_7, window_bounds = array<i64: 2, 256>}]} {
    %c0 = arith.constant 0 : index
    %c0_0 = arith.constant 0 : index
    %0 = vector.load %arg1[%c0, %c0_0] : memref<2x289xf32, #tpu.memory_space<vmem>>, vector<2x289xf32>
    %1 = arith.truncf %0 : vector<2x289xf32> to vector<2x289xbf16>
    %c0_1 = arith.constant 0 : index
    %c0_2 = arith.constant 0 : index
    %2 = vector.load %arg2[%c0_1, %c0_2] : memref<289x256xbf16, #tpu.memory_space<vmem>>, vector<289x256xbf16>
    %cst = arith.constant dense<0.000000e+00> : vector<2x256xf32>
    %3 = tpu.matmul %1, %2, %cst {dimension_numbers = #tpu.dot_dimension_numbers<[1], [0], [0], [1], [0, 0, 1, 1], [], []>} : vector<2x289xbf16>, vector<289x256xbf16>, vector<2x256xf32> -> vector<2x256xf32>
    %c0_3 = arith.constant 0 : index
    %c0_4 = arith.constant 0 : index
    %4 = vector.load %arg3[%c0_3, %c0_4] : memref<1x256xf32, #tpu.memory_space<vmem>>, vector<1x256xf32>
    %5 = vector.broadcast %4 : vector<1x256xf32> to vector<2x256xf32>
    %6 = arith.addf %3, %5 : vector<2x256xf32>
    %cst_5 = arith.constant 0.000000e+00 : f32
    %7 = vector.broadcast %cst_5 : f32 to vector<2x256xf32>
    %8 = arith.maximumf %6, %7 : vector<2x256xf32>
    %9 = arith.truncf %8 : vector<2x256xf32> to vector<2x256xbf16>
    %c0_6 = arith.constant 0 : index
    %c0_7 = arith.constant 0 : index
    %10 = vector.load %arg4[%c0_6, %c0_7] : memref<256x288xbf16, #tpu.memory_space<vmem>>, vector<256x288xbf16>
    %cst_8 = arith.constant dense<0.000000e+00> : vector<2x288xf32>
    %11 = tpu.matmul %9, %10, %cst_8 {dimension_numbers = #tpu.dot_dimension_numbers<[1], [0], [0], [1], [0, 0, 1, 1], [], []>} : vector<2x256xbf16>, vector<256x288xbf16>, vector<2x288xf32> -> vector<2x288xf32>
    %c0_9 = arith.constant 0 : index
    %c0_10 = arith.constant 0 : index
    %12 = vector.load %arg5[%c0_9, %c0_10] : memref<1x288xf32, #tpu.memory_space<vmem>>, vector<1x288xf32>
    %13 = vector.broadcast %12 : vector<1x288xf32> to vector<2x288xf32>
    %14 = arith.addf %11, %13 : vector<2x288xf32>
    %cst_11 = arith.constant 0.000000e+00 : f32
    %15 = vector.broadcast %cst_11 : f32 to vector<2x288xf32>
    %16 = arith.maximumf %14, %15 : vector<2x288xf32>
    %17 = arith.truncf %16 : vector<2x288xf32> to vector<2x288xbf16>
    %c0_12 = arith.constant 0 : index
    %c0_13 = arith.constant 0 : index
    %18 = vector.load %arg6[%c0_12, %c0_13] : memref<288x256xbf16, #tpu.memory_space<vmem>>, vector<288x256xbf16>
    %cst_14 = arith.constant dense<0.000000e+00> : vector<2x256xf32>
    %19 = tpu.matmul %17, %18, %cst_14 {dimension_numbers = #tpu.dot_dimension_numbers<[1], [0], [0], [1], [0, 0, 1, 1], [], []>} : vector<2x288xbf16>, vector<288x256xbf16>, vector<2x256xf32> -> vector<2x256xf32>
    %c0_15 = arith.constant 0 : index
    %c0_16 = arith.constant 0 : index
    %20 = vector.load %arg7[%c0_15, %c0_16] : memref<1x256xf32, #tpu.memory_space<vmem>>, vector<1x256xf32>
    %21 = vector.broadcast %20 : vector<1x256xf32> to vector<2x256xf32>
    %22 = arith.addf %19, %21 : vector<2x256xf32>
    %cst_17 = arith.constant 0.000000e+00 : f32
    %23 = vector.broadcast %cst_17 : f32 to vector<2x256xf32>
    %24 = arith.maximumf %22, %23 : vector<2x256xf32>
    %c0_18 = arith.constant 0 : index
    %c0_19 = arith.constant 0 : index
    %25 = vector.load %arg8[%c0_18, %c0_19] : memref<2x256xf32, #tpu.memory_space<vmem>>, vector<2x256xf32>
    tpu.vector_store %arg8[%c0_18, %c0_19], %24 {strides = array<i32>} : memref<2x256xf32, #tpu.memory_space<vmem>>, vector<2x256xf32>,
    return
  }
  func.func @transform_0(%arg0: i32) -> (i32, i32) {
    %c0_i32 = arith.constant 0 : i32
    %c0_i32_0 = arith.constant 0 : i32
    return %arg0, %c0_i32 : i32, i32
  }
  func.func @transform_1(%arg0: i32) -> (i32, i32) {
    %c0_i32 = arith.constant 0 : i32
    %c0_i32_0 = arith.constant 0 : i32
    %c0_i32_1 = arith.constant 0 : i32
    return %c0_i32, %c0_i32_0 : i32, i32
  }
  func.func @transform_2(%arg0: i32) -> (i32, i32) {
    %c0_i32 = arith.constant 0 : i32
    %c0_i32_0 = arith.constant 0 : i32
    %c0_i32_1 = arith.constant 0 : i32
    return %c0_i32, %c0_i32_0 : i32, i32
  }
  func.func @transform_3(%arg0: i32) -> (i32, i32) {
    %c0_i32 = arith.constant 0 : i32
    %c0_i32_0 = arith.constant 0 : i32
    %c0_i32_1 = arith.constant 0 : i32
    return %c0_i32, %c0_i32_0 : i32, i32
  }
  func.func @transform_4(%arg0: i32) -> (i32, i32) {
    %c0_i32 = arith.constant 0 : i32
    %c0_i32_0 = arith.constant 0 : i32
    %c0_i32_1 = arith.constant 0 : i32
    return %c0_i32, %c0_i32_0 : i32, i32
  }
  func.func @transform_5(%arg0: i32) -> (i32, i32) {
    %c0_i32 = arith.constant 0 : i32
    %c0_i32_0 = arith.constant 0 : i32
    %c0_i32_1 = arith.constant 0 : i32
    return %c0_i32, %c0_i32_0 : i32, i32
  }
  func.func @transform_6(%arg0: i32) -> (i32, i32) {
    %c0_i32 = arith.constant 0 : i32
    %c0_i32_0 = arith.constant 0 : i32
    %c0_i32_1 = arith.constant 0 : i32
    return %c0_i32, %c0_i32_0 : i32, i32
  }
  func.func @transform_7(%arg0: i32) -> (i32, i32) {
    %c0_i32 = arith.constant 0 : i32
    %c0_i32_0 = arith.constant 0 : i32
    return %arg0, %c0_i32 : i32, i32
  }
}

</mosaic_0001>

<llo_original>
// kernel: _lambda_.1
$region0: #{_lambda_.1}
  #allocation0 [shape = 'u32[]', space=smem, size = 0x4, offset = 0x4, fixed_abs, tag = 'smem constant byte address 0x4 - core index']
  #allocation1 [shape = 'u32[72,128]{1,0:T(1,128)}', space=vmem, size = 0x9000, scoped, tag = 'internal scratch']
  %s0 = inlined_call_operand.vmem [shape: f32[2,289], index: 0, kind: input, shape index: {}]
  %s1 = inlined_call_operand.hbm [shape: bf16[289,256], index: 1, kind: input, shape index: {}]
  %s2 = inlined_call_operand.vmem [shape: f32[1,256], index: 2, kind: input, shape index: {}, may-alias: {2,6}]
  %s3 = inlined_call_operand.hbm [shape: bf16[256,288], index: 3, kind: input, shape index: {}]
  %s4 = inlined_call_operand.vmem [shape: f32[1,288], index: 4, kind: input, shape index: {}]
  %s5 = inlined_call_operand.hbm [shape: bf16[288,256], index: 5, kind: input, shape index: {}]
  %s6 = inlined_call_operand.vmem [shape: f32[1,256], index: 6, kind: input, shape index: {}, may-alias: {2,6}]
  %s7 = inlined_call_operand.hbm [shape: f32[2,256], index: 7, kind: output, shape index: {}]
  %s8 = sld [smem:[#allocation0]]
  $region50: #{_lambda_.1} parent=0
    _
  %s10 = ssub.s32 1, %s8
  %s11 = scalar_select 0, %s10, %s8
  $region1: #{_lambda_.1} parent=0
    #allocation2 [shape = 'u8[151552]{0}', space=vmem, size = 0x25000, scoped, tag = 'input window, operand 1, single buffered']
    #allocation3 [shape = 's32[1]{0}', space=sflag, size = 0x4, scoped, tag = 'scoped memory for _lambda_.1']
    #allocation4 [shape = 's32[1]{0}', space=sflag, size = 0x4, scoped, tag = 'scoped memory for _lambda_.1']
    #allocation5 [shape = 'u8[196608]{0}', space=vmem, size = 0x30000, scoped, tag = 'input window, operand 3, single buffered']
    #allocation6 [shape = 's32[1]{0}', space=sflag, size = 0x4, scoped, tag = 'scoped memory for _lambda_.1']
    #allocation7 [shape = 'u8[147456]{0}', space=vmem, size = 0x24000, scoped, tag = 'input window, operand 5, single buffered']
    #allocation8 [shape = 'u8[2048]{0}', space=vmem, size = 0x800, scoped, tag = 'output window, operand 0, single buffered']
    %12 = vsyncpa [#allocation3], 0
    %13 = vsyncpa [#allocation6], 0
    %14 = vsyncpa [#allocation4], 0
    // Predicated region
    $region2: #{_lambda_.1} parent=1 // pred_check
      _
    $region3: #{_lambda_.1} parent=1 // pred_check_branch
      %16 = sbr.rel (0) target = $region5
    $region4: #{_lambda_.1} parent=1 // pred_region
      _
    $region5: #{_lambda_.1} parent=1 // pred_fallthru
      _
    // Predicated region
    $region6: #{_lambda_.1} parent=1 // pred_check
      _
    $region7: #{_lambda_.1} parent=1 // pred_check_branch
      %18 = sbr.rel (0) target = $region9
    $region8: #{_lambda_.1} parent=1 // pred_region
      %20 = vsyncadd [#allocation3], 0
      %s21 = sshll.u32 %s1, 4
      %s22 = int_to_ptr.hbm [resolvable:$true] %s21
      %s23 = sshll.u32 [#allocation2], 4
      %s24 = int_to_ptr.vmem [resolvable:$true] %s23
      %29 = dma.hbm_to_vmem [thread:$0]  %s22, 4736, %s24, [#allocation3], 128, 128, 8
    $region9: #{_lambda_.1} parent=1 // pred_fallthru
      _
    // Predicated region
    $region10: #{_lambda_.1} parent=1 // pred_check
      _
    $region11: #{_lambda_.1} parent=1 // pred_check_branch
      %31 = sbr.rel (0) target = $region13
    $region12: #{_lambda_.1} parent=1 // pred_region
      _
    $region13: #{_lambda_.1} parent=1 // pred_fallthru
      _
    // Predicated region
    $region14: #{_lambda_.1} parent=1 // pred_check
      _
    $region15: #{_lambda_.1} parent=1 // pred_check_branch
      %33 = sbr.rel (0) target = $region17
    $region16: #{_lambda_.1} parent=1 // pred_region
      %35 = vsyncadd [#allocation6], 0
      %s36 = sshll.u32 %s3, 4
      %s37 = int_to_ptr.hbm [resolvable:$true] %s36
      %s38 = sshll.u32 [#allocation5], 4
      %s39 = int_to_ptr.vmem [resolvable:$true] %s38
      %44 = dma.hbm_to_vmem [thread:$0]  %s37, 6144, %s39, [#allocation6], 192, 192, 12
    $region17: #{_lambda_.1} parent=1 // pred_fallthru
      _
    // Predicated region
    $region18: #{_lambda_.1} parent=1 // pred_check
      _
    $region19: #{_lambda_.1} parent=1 // pred_check_branch
      %46 = sbr.rel (0) target = $region21
    $region20: #{_lambda_.1} parent=1 // pred_region
      _
    $region21: #{_lambda_.1} parent=1 // pred_fallthru
      _
    // Predicated region
    $region22: #{_lambda_.1} parent=1 // pred_check
      _
    $region23: #{_lambda_.1} parent=1 // pred_check_branch
      %48 = sbr.rel (0) target = $region25
    $region24: #{_lambda_.1} parent=1 // pred_region
      %50 = vsyncadd [#allocation6], 0
      %s51 = sshll.u32 %s5, 4
      %s52 = int_to_ptr.hbm [resolvable:$true] %s51
      %s53 = sshll.u32 [#allocation7], 4
      %s54 = int_to_ptr.vmem [resolvable:$true] %s53
      %59 = dma.hbm_to_vmem [thread:$0]  %s52, 4608, %s54, [#allocation6], 128, 128, 8
    $region25: #{_lambda_.1} parent=1 // pred_fallthru
      _
    // Predicated region
    $region26: #{_lambda_.1} parent=1 // pred_check
      _
    $region27: #{_lambda_.1} parent=1 // pred_check_branch
      %61 = sbr.rel (0) target = $region29
    $region28: #{_lambda_.1} parent=1 // pred_region
      _
    $region29: #{_lambda_.1} parent=1 // pred_fallthru
      _
    // Predicated region
    $region30: #{_lambda_.1} parent=1 // pred_check
      _
    $region31: #{_lambda_.1} parent=1 // pred_check_branch
      %63 = sbr.rel (0) target = $region33
    $region32: #{_lambda_.1} parent=1 // pred_region
      %65 = dma.done [#allocation3], 4736
    $region33: #{_lambda_.1} parent=1 // pred_fallthru
      _
    // Predicated region
    $region34: #{_lambda_.1} parent=1 // pred_check
      _
    $region35: #{_lambda_.1} parent=1 // pred_check_branch
      %67 = sbr.rel (0) target = $region37
    $region36: #{_lambda_.1} parent=1 // pred_region
      %69 = dma.done [#allocation6], 6144
    $region37: #{_lambda_.1} parent=1 // pred_fallthru
      _
    // Predicated region
    $region38: #{_lambda_.1} parent=1 // pred_check
      _
    $region39: #{_lambda_.1} parent=1 // pred_check_branch
      %71 = sbr.rel (0) target = $region41
    $region40: #{_lambda_.1} parent=1 // pred_region
      %73 = dma.done [#allocation6], 4608
    $region41: #{_lambda_.1} parent=1 // pred_fallthru
      _
    %v75 = vld [vmem:[%s0] sm:$0x3f]
    %77 = vst [vmem:[#allocation1] ss:$4 sm:$0xff] %v75
    %v78 = vld.sshfl [vmem:[#allocation1] sm:$0xff pattern:$0x73625140]
    %v79 = vld.sshfl [vmem:[#allocation1 + $0x8] sm:$0xff pattern:$0x73625140]
    %v80 = vld.sshfl [vmem:[#allocation1 + $0x10] sm:$0xff pattern:$0x73625140]
    %v84 = vpack.c.bf16 %v78, %v78
    %v85 = vpack.c.bf16 %v79, %v79
    %v86 = vpack.c.bf16 %v80, %v80
    %v87 = vld [vmem:[#allocation2] sm:$0xff]
    %v88 = vld [vmem:[#allocation2 + $0x8] sm:$0xff]
    %v89 = vld [vmem:[#allocation2 + $0x10] sm:$0xff]
    %v90 = vld [vmem:[#allocation2 + $0x18] sm:$0xff]
    %v91 = vld [vmem:[#allocation2 + $0x20] sm:$0xff]
    %v92 = vld [vmem:[#allocation2 + $0x28] sm:$0xff]
    %v93 = vld [vmem:[#allocation2 + $0x30] sm:$0xff]
    %v94 = vld [vmem:[#allocation2 + $0x38] sm:$0xff]
    %v95 = vld [vmem:[#allocation2 + $0x40] sm:$0xff]
    %v96 = vld [vmem:[#allocation2 + $0x48] sm:$0xff]
    %v97 = vld [vmem:[#allocation2 + $0x50] sm:$0xff]
    %v98 = vld [vmem:[#allocation2 + $0x58] sm:$0xff]
    %v99 = vld [vmem:[#allocation2 + $0x60] sm:$0xff]
    %v100 = vld [vmem:[#allocation2 + $0x68] sm:$0xff]
    %v101 = vld [vmem:[#allocation2 + $0x70] sm:$0xff]
    %v102 = vld [vmem:[#allocation2 + $0x78] sm:$0xff]
    %v103 = vld [vmem:[#allocation2 + $0x80] sm:$0xff]
    %v104 = vld [vmem:[#allocation2 + $0x88] sm:$0xff]
    %v105 = vld [vmem:[#allocation2 + $0x90] sm:$0xff]
    %v106 = vld [vmem:[#allocation2 + $0x98] sm:$0xff]
    %v107 = vld [vmem:[#allocation2 + $0xa0] sm:$0xff]
    %v108 = vld [vmem:[#allocation2 + $0xa8] sm:$0xff]
    %v109 = vld [vmem:[#allocation2 + $0xb0] sm:$0xff]
    %v110 = vld [vmem:[#allocation2 + $0xb8] sm:$0xff]
    %v111 = vld [vmem:[#allocation2 + $0xc0] sm:$0xff]
    %v112 = vld [vmem:[#allocation2 + $0xc8] sm:$0xff]
    %v113 = vld [vmem:[#allocation2 + $0xd0] sm:$0xff]
    %v114 = vld [vmem:[#allocation2 + $0xd8] sm:$0xff]
    %v115 = vld [vmem:[#allocation2 + $0xe0] sm:$0xff]
    %v116 = vld [vmem:[#allocation2 + $0xe8] sm:$0xff]
    %v117 = vld [vmem:[#allocation2 + $0xf0] sm:$0xff]
    %v118 = vld [vmem:[#allocation2 + $0xf8] sm:$0xff]
    %v119 = vld [vmem:[#allocation2 + $0x100] sm:$0xff]
    %v120 = vld [vmem:[#allocation2 + $0x108] sm:$0xff]
    %v121 = vld [vmem:[#allocation2 + $0x110] sm:$0xff]
    %v122 = vld [vmem:[#allocation2 + $0x118] sm:$0xff]
    %v123 = vld [vmem:[#allocation2 + $0x120] sm:$0x11]
    %v124 = vld [vmem:[%s2] sm:$0x3]
    %v126 = vperm.slane %v124, 0
    %v127 = vperm.slane %v124, 1
    %v167 = vunpack.c.l.b16 %v87
    %v168 = vunpack.c.h.b16 %v87
    %v169 = vunpack.c.l.b16 %v88
    %v170 = vunpack.c.h.b16 %v88
    %v171 = vunpack.c.l.b16 %v89
    %v172 = vunpack.c.h.b16 %v89
    %v173 = vunpack.c.l.b16 %v90
    %v174 = vunpack.c.h.b16 %v90
    %v175 = vunpack.c.l.b16 %v91
    %v176 = vunpack.c.h.b16 %v91
    %v177 = vunpack.c.l.b16 %v92
    %v178 = vunpack.c.h.b16 %v92
    %v179 = vunpack.c.l.b16 %v93
    %v180 = vunpack.c.h.b16 %v93
    %v181 = vunpack.c.l.b16 %v94
    %v182 = vunpack.c.h.b16 %v94
    %v183 = vunpack.c.l.b16 %v95
    %v184 = vunpack.c.h.b16 %v95
    %v185 = vunpack.c.l.b16 %v96
    %v186 = vunpack.c.h.b16 %v96
    %v187 = vunpack.c.l.b16 %v97
    %v188 = vunpack.c.h.b16 %v97
    %v189 = vunpack.c.l.b16 %v98
    %v190 = vunpack.c.h.b16 %v98
    %v191 = vunpack.c.l.b16 %v99
    %v192 = vunpack.c.h.b16 %v99
    %v193 = vunpack.c.l.b16 %v100
    %v194 = vunpack.c.h.b16 %v100
    %v195 = vunpack.c.l.b16 %v101
    %v196 = vunpack.c.h.b16 %v101
    %v197 = vunpack.c.l.b16 %v102
    %v198 = vunpack.c.h.b16 %v102
    %v199 = vunpack.c.l.b16 %v103
    %v200 = vunpack.c.h.b16 %v103
    %v201 = vunpack.c.l.b16 %v104
    %v202 = vunpack.c.h.b16 %v104
    %v203 = vunpack.c.l.b16 %v105
    %v204 = vunpack.c.h.b16 %v105
    %v205 = vunpack.c.l.b16 %v106
    %v206 = vunpack.c.h.b16 %v106
    %v207 = vunpack.c.l.b16 %v107
    %v208 = vunpack.c.h.b16 %v107
    %v209 = vunpack.c.l.b16 %v108
    %v210 = vunpack.c.h.b16 %v108
    %v211 = vunpack.c.l.b16 %v109
    %v212 = vunpack.c.h.b16 %v109
    %v213 = vunpack.c.l.b16 %v110
    %v214 = vunpack.c.h.b16 %v110
    %v215 = vunpack.c.l.b16 %v111
    %v216 = vunpack.c.h.b16 %v111
    %v217 = vunpack.c.l.b16 %v112
    %v218 = vunpack.c.h.b16 %v112
    %v219 = vunpack.c.l.b16 %v113
    %v220 = vunpack.c.h.b16 %v113
    %v221 = vunpack.c.l.b16 %v114
    %v222 = vunpack.c.h.b16 %v114
    %v223 = vunpack.c.l.b16 %v115
    %v224 = vunpack.c.h.b16 %v115
    %v225 = vunpack.c.l.b16 %v116
    %v226 = vunpack.c.h.b16 %v116
    %v227 = vunpack.c.l.b16 %v117
    %v228 = vunpack.c.h.b16 %v117
    %v229 = vunpack.c.l.b16 %v118
    %v230 = vunpack.c.h.b16 %v118
    %v231 = vunpack.c.l.b16 %v119
    %v232 = vunpack.c.h.b16 %v119
    %v233 = vunpack.c.l.b16 %v120
    %v234 = vunpack.c.h.b16 %v120
    %v235 = vunpack.c.l.b16 %v121
    %v236 = vunpack.c.h.b16 %v121
    %v237 = vunpack.c.l.b16 %v122
    %v238 = vunpack.c.h.b16 %v122
    %v239 = vunpack.c.l.b16 %v123
    %v240 = vunpack.c.h.b16 %v123
    %v241 = vpack.c.b16 %v169, %v167
    %v242 = vpack.c.b16 %v170, %v168
    %v243 = vpack.c.b16 %v173, %v171
    %v244 = vpack.c.b16 %v174, %v172
    %v245 = vpack.c.b16 %v177, %v175
    %v246 = vpack.c.b16 %v178, %v176
    %v247 = vpack.c.b16 %v181, %v179
    %v248 = vpack.c.b16 %v182, %v180
    %v249 = vpack.c.b16 %v185, %v183
    %v250 = vpack.c.b16 %v186, %v184
    %v251 = vpack.c.b16 %v189, %v187
    %v252 = vpack.c.b16 %v190, %v188
    %v253 = vpack.c.b16 %v193, %v191
    %v254 = vpack.c.b16 %v194, %v192
    %v255 = vpack.c.b16 %v197, %v195
    %v256 = vpack.c.b16 %v198, %v196
    %v257 = vpack.c.b16 %v201, %v199
    %v258 = vpack.c.b16 %v202, %v200
    %v259 = vpack.c.b16 %v205, %v203
    %v260 = vpack.c.b16 %v206, %v204
    %v261 = vpack.c.b16 %v209, %v207
    %v262 = vpack.c.b16 %v210, %v208
    %v263 = vpack.c.b16 %v213, %v211
    %v264 = vpack.c.b16 %v214, %v212
    %v265 = vpack.c.b16 %v217, %v215
    %v266 = vpack.c.b16 %v218, %v216
    %v267 = vpack.c.b16 %v221, %v219
    %v268 = vpack.c.b16 %v222, %v220
    %v269 = vpack.c.b16 %v225, %v223
    %v270 = vpack.c.b16 %v226, %v224
    %v271 = vpack.c.b16 %v229, %v227
    %v272 = vpack.c.b16 %v230, %v228
    %v273 = vpack.c.b16 %v233, %v231
    %v274 = vpack.c.b16 %v234, %v232
    %v275 = vpack.c.b16 %v237, %v235
    %v276 = vpack.c.b16 %v238, %v236
    %v277 = vpack.c.b16 %v239, %v239
    %v278 = vpack.c.b16 %v240, %v240
    %vm315 = vcmask 269312
    %v317 = vsel %vm315, %v86, 0
    %vm319 = vcmask 1040384
    %v320 = vsel 0, 4294967295, 65535
    %v321 = vsel %vm319, %v320, 0
    %v323 = vand.u32 %v277, %v321
    %v326 = vand.u32 %v278, %v321
    %328 = vmatpush.bf16.msra.mxu0 %v255
    %329 = vmatpush.bf16.msra.mxu0 %v253
    %330 = vmatpush.bf16.msra.mxu0 %v251
    %331 = vmatpush.bf16.msra.mxu0 %v249
    %332 = vmatpush.bf16.msra.mxu0 %v247
    %333 = vmatpush.bf16.msra.mxu0 %v245
    %334 = vmatpush.bf16.msra.mxu0 %v243
    %335 = vmatpush.bf16.msra.mxu0 %v241
    %336 = vmatmul.bf16.gmra.mxu0 %v84
    %v337 = vpop.f32.mrf.mxu0
    %v338 = vadd.f32 %v126, %v337
    %v339 = vpop.f32.mrf.mxu0
    %340 = vdwg.mxu0
    %341 = vmatpush.bf16.msra.mxu0 %v271
    %342 = vmatpush.bf16.msra.mxu0 %v269
    %343 = vmatpush.bf16.msra.mxu0 %v267
    %344 = vmatpush.bf16.msra.mxu0 %v265
    %345 = vmatpush.bf16.msra.mxu0 %v263
    %346 = vmatpush.bf16.msra.mxu0 %v261
    %347 = vmatpush.bf16.msra.mxu0 %v259
    %348 = vmatpush.bf16.msra.mxu0 %v257
    %349 = vmatmul.bf16.gmra.mxu0 %v85
    %v350 = vpop.f32.mrf.mxu0
    %v351 = vadd.f32 %v338, %v350
    %v352 = vpop.f32.mrf.mxu0
    %353 = vdwg.mxu0
    %354 = vmatpush.bf16.msra.mxu0 0
    %355 = vmatpush.bf16.msra.mxu0 0
    %356 = vmatpush.bf16.msra.mxu0 0
    %357 = vmatpush.bf16.msra.mxu0 0
    %358 = vmatpush.bf16.msra.mxu0 0
    %359 = vmatpush.bf16.msra.mxu0 %v323
    %360 = vmatpush.bf16.msra.mxu0 %v275
    %361 = vmatpush.bf16.msra.mxu0 %v273
    %362 = vmatmul.bf16.gmra.mxu0 %v317
    %v363 = vpop.f32.mrf.mxu0
    %v364 = vadd.f32 %v351, %v363
    %v365 = vpop.f32.mrf.mxu0
    %366 = vdwg.mxu0
    %367 = vmatpush.bf16.msra.mxu0 %v256
    %368 = vmatpush.bf16.msra.mxu0 %v254
    %369 = vmatpush.bf16.msra.mxu0 %v252
    %370 = vmatpush.bf16.msra.mxu0 %v250
    %371 = vmatpush.bf16.msra.mxu0 %v248
    %372 = vmatpush.bf16.msra.mxu0 %v246
    %373 = vmatpush.bf16.msra.mxu0 %v244
    %374 = vmatpush.bf16.msra.mxu0 %v242
    %375 = vmatmul.bf16.gmra.mxu0 %v84
    %v376 = vpop.f32.mrf.mxu0
    %v377 = vadd.f32 %v127, %v376
    %v378 = vpop.f32.mrf.mxu0
    %379 = vdwg.mxu0
    %380 = vmatpush.bf16.msra.mxu0 %v272
    %381 = vmatpush.bf16.msra.mxu0 %v270
    %382 = vmatpush.bf16.msra.mxu0 %v268
    %383 = vmatpush.bf16.msra.mxu0 %v266
    %384 = vmatpush.bf16.msra.mxu0 %v264
    %385 = vmatpush.bf16.msra.mxu0 %v262
    %386 = vmatpush.bf16.msra.mxu0 %v260
    %387 = vmatpush.bf16.msra.mxu0 %v258
    %388 = vmatmul.bf16.gmra.mxu0 %v85
    %v389 = vpop.f32.mrf.mxu0
    %v390 = vadd.f32 %v377, %v389
    %v391 = vpop.f32.mrf.mxu0
    %392 = vdwg.mxu0
    %393 = vmatpush.bf16.msra.mxu0 0
    %394 = vmatpush.bf16.msra.mxu0 0
    %395 = vmatpush.bf16.msra.mxu0 0
    %396 = vmatpush.bf16.msra.mxu0 0
    %397 = vmatpush.bf16.msra.mxu0 0
    %398 = vmatpush.bf16.msra.mxu0 %v326
    %399 = vmatpush.bf16.msra.mxu0 %v276
    %400 = vmatpush.bf16.msra.mxu0 %v274
    %401 = vmatmul.bf16.gmra.mxu0 %v317
    %v402 = vpop.f32.mrf.mxu0
    %v403 = vadd.f32 %v390, %v402
    %v404 = vpop.f32.mrf.mxu0
    %405 = vdwg.mxu0
    %v406 = vmax.f32 %v364, 0.0
    %v407 = vmax.f32 %v403, 0.0
    %v408 = vpack.c.bf16 %v406, %v406
    %v409 = vpack.c.bf16 %v407, %v407
    %v410 = vld [vmem:[#allocation5] sm:$0xff]
    %v411 = vld [vmem:[#allocation5 + $0x8] sm:$0xf]
    %v412 = vld [vmem:[#allocation5 + $0xc] sm:$0xff]
    %v413 = vld [vmem:[#allocation5 + $0x14] sm:$0xf]
    %v414 = vld [vmem:[#allocation5 + $0x18] sm:$0xff]
    %v415 = vld [vmem:[#allocation5 + $0x20] sm:$0xf]
    %v416 = vld [vmem:[#allocation5 + $0x24] sm:$0xff]
    %v417 = vld [vmem:[#allocation5 + $0x2c] sm:$0xf]
    %v418 = vld [vmem:[#allocation5 + $0x30] sm:$0xff]
    %v419 = vld [vmem:[#allocation5 + $0x38] sm:$0xf]
    %v420 = vld [vmem:[#allocation5 + $0x3c] sm:$0xff]
    %v421 = vld [vmem:[#allocation5 + $0x44] sm:$0xf]
    %v422 = vld [vmem:[#allocation5 + $0x48] sm:$0xff]
    %v423 = vld [vmem:[#allocation5 + $0x50] sm:$0xf]
    %v424 = vld [vmem:[#allocation5 + $0x54] sm:$0xff]
    %v425 = vld [vmem:[#allocation5 + $0x5c] sm:$0xf]
    %v426 = vld [vmem:[#allocation5 + $0x60] sm:$0xff]
    %v427 = vld [vmem:[#allocation5 + $0x68] sm:$0xf]
    %v428 = vld [vmem:[#allocation5 + $0x6c] sm:$0xff]
    %v429 = vld [vmem:[#allocation5 + $0x74] sm:$0xf]
    %v430 = vld [vmem:[#allocation5 + $0x78] sm:$0xff]
    %v431 = vld [vmem:[#allocation5 + $0x80] sm:$0xf]
    %v432 = vld [vmem:[#allocation5 + $0x84] sm:$0xff]
    %v433 = vld [vmem:[#allocation5 + $0x8c] sm:$0xf]
    %v434 = vld [vmem:[#allocation5 + $0x90] sm:$0xff]
    %v435 = vld [vmem:[#allocation5 + $0x98] sm:$0xf]
    %v436 = vld [vmem:[#allocation5 + $0x9c] sm:$0xff]
    %v437 = vld [vmem:[#allocation5 + $0xa4] sm:$0xf]
    %v438 = vld [vmem:[#allocation5 + $0xa8] sm:$0xff]
    %v439 = vld [vmem:[#allocation5 + $0xb0] sm:$0xf]
    %v440 = vld [vmem:[#allocation5 + $0xb4] sm:$0xff]
    %v441 = vld [vmem:[#allocation5 + $0xbc] sm:$0xf]
    %v442 = vld [vmem:[#allocation5 + $0xc0] sm:$0xff]
    %v443 = vld [vmem:[#allocation5 + $0xc8] sm:$0xf]
    %v444 = vld [vmem:[#allocation5 + $0xcc] sm:$0xff]
    %v445 = vld [vmem:[#allocation5 + $0xd4] sm:$0xf]
    %v446 = vld [vmem:[#allocation5 + $0xd8] sm:$0xff]
    %v447 = vld [vmem:[#allocation5 + $0xe0] sm:$0xf]
    %v448 = vld [vmem:[#allocation5 + $0xe4] sm:$0xff]
    %v449 = vld [vmem:[#allocation5 + $0xec] sm:$0xf]
    %v450 = vld [vmem:[#allocation5 + $0xf0] sm:$0xff]
    %v451 = vld [vmem:[#allocation5 + $0xf8] sm:$0xf]
    %v452 = vld [vmem:[#allocation5 + $0xfc] sm:$0xff]
    %v453 = vld [vmem:[#allocation5 + $0x104] sm:$0xf]
    %v454 = vld [vmem:[#allocation5 + $0x108] sm:$0xff]
    %v455 = vld [vmem:[#allocation5 + $0x110] sm:$0xf]
    %v456 = vld [vmem:[#allocation5 + $0x114] sm:$0xff]
    %v457 = vld [vmem:[#allocation5 + $0x11c] sm:$0xf]
    %v458 = vld [vmem:[#allocation5 + $0x120] sm:$0xff]
    %v459 = vld [vmem:[#allocation5 + $0x128] sm:$0xf]
    %v460 = vld [vmem:[#allocation5 + $0x12c] sm:$0xff]
    %v461 = vld [vmem:[#allocation5 + $0x134] sm:$0xf]
    %v462 = vld [vmem:[#allocation5 + $0x138] sm:$0xff]
    %v463 = vld [vmem:[#allocation5 + $0x140] sm:$0xf]
    %v464 = vld [vmem:[#allocation5 + $0x144] sm:$0xff]
    %v465 = vld [vmem:[#allocation5 + $0x14c] sm:$0xf]
    %v466 = vld [vmem:[#allocation5 + $0x150] sm:$0xff]
    %v467 = vld [vmem:[#allocation5 + $0x158] sm:$0xf]
    %v468 = vld [vmem:[#allocation5 + $0x15c] sm:$0xff]
    %v469 = vld [vmem:[#allocation5 + $0x164] sm:$0xf]
    %v470 = vld [vmem:[#allocation5 + $0x168] sm:$0xff]
    %v471 = vld [vmem:[#allocation5 + $0x170] sm:$0xf]
    %v472 = vld [vmem:[#allocation5 + $0x174] sm:$0xff]
    %v473 = vld [vmem:[#allocation5 + $0x17c] sm:$0xf]
    %v474 = vld [vmem:[%s4] sm:$0x7]
    %v476 = vperm.slane %v474, 0
    %v477 = vperm.slane %v474, 1
    %v478 = vperm.slane %v474, 2
    %v546 = vunpack.c.l.b16 %v410
    %v547 = vunpack.c.h.b16 %v410
    %v548 = vunpack.c.l.b16 %v411
    %v549 = vunpack.c.l.b16 %v412
    %v550 = vunpack.c.h.b16 %v412
    %v551 = vunpack.c.l.b16 %v413
    %v552 = vunpack.c.l.b16 %v414
    %v553 = vunpack.c.h.b16 %v414
    %v554 = vunpack.c.l.b16 %v415
    %v555 = vunpack.c.l.b16 %v416
    %v556 = vunpack.c.h.b16 %v416
    %v557 = vunpack.c.l.b16 %v417
    %v558 = vunpack.c.l.b16 %v418
    %v559 = vunpack.c.h.b16 %v418
    %v560 = vunpack.c.l.b16 %v419
    %v561 = vunpack.c.l.b16 %v420
    %v562 = vunpack.c.h.b16 %v420
    %v563 = vunpack.c.l.b16 %v421
    %v564 = vunpack.c.l.b16 %v422
    %v565 = vunpack.c.h.b16 %v422
    %v566 = vunpack.c.l.b16 %v423
    %v567 = vunpack.c.l.b16 %v424
    %v568 = vunpack.c.h.b16 %v424
    %v569 = vunpack.c.l.b16 %v425
    %v570 = vunpack.c.l.b16 %v426
    %v571 = vunpack.c.h.b16 %v426
    %v572 = vunpack.c.l.b16 %v427
    %v573 = vunpack.c.l.b16 %v428
    %v574 = vunpack.c.h.b16 %v428
    %v575 = vunpack.c.l.b16 %v429
    %v576 = vunpack.c.l.b16 %v430
    %v577 = vunpack.c.h.b16 %v430
    %v578 = vunpack.c.l.b16 %v431
    %v579 = vunpack.c.l.b16 %v432
    %v580 = vunpack.c.h.b16 %v432
    %v581 = vunpack.c.l.b16 %v433
    %v582 = vunpack.c.l.b16 %v434
    %v583 = vunpack.c.h.b16 %v434
    %v584 = vunpack.c.l.b16 %v435
    %v585 = vunpack.c.l.b16 %v436
    %v586 = vunpack.c.h.b16 %v436
    %v587 = vunpack.c.l.b16 %v437
    %v588 = vunpack.c.l.b16 %v438
    %v589 = vunpack.c.h.b16 %v438
    %v590 = vunpack.c.l.b16 %v439
    %v591 = vunpack.c.l.b16 %v440
    %v592 = vunpack.c.h.b16 %v440
    %v593 = vunpack.c.l.b16 %v441
    %v594 = vunpack.c.l.b16 %v442
    %v595 = vunpack.c.h.b16 %v442
    %v596 = vunpack.c.l.b16 %v443
    %v597 = vunpack.c.l.b16 %v444
    %v598 = vunpack.c.h.b16 %v444
    %v599 = vunpack.c.l.b16 %v445
    %v600 = vunpack.c.l.b16 %v446
    %v601 = vunpack.c.h.b16 %v446
    %v602 = vunpack.c.l.b16 %v447
    %v603 = vunpack.c.l.b16 %v448
    %v604 = vunpack.c.h.b16 %v448
    %v605 = vunpack.c.l.b16 %v449
    %v606 = vunpack.c.l.b16 %v450
    %v607 = vunpack.c.h.b16 %v450
    %v608 = vunpack.c.l.b16 %v451
    %v609 = vunpack.c.l.b16 %v452
    %v610 = vunpack.c.h.b16 %v452
    %v611 = vunpack.c.l.b16 %v453
    %v612 = vunpack.c.l.b16 %v454
    %v613 = vunpack.c.h.b16 %v454
    %v614 = vunpack.c.l.b16 %v455
    %v615 = vunpack.c.l.b16 %v456
    %v616 = vunpack.c.h.b16 %v456
    %v617 = vunpack.c.l.b16 %v457
    %v618 = vunpack.c.l.b16 %v458
    %v619 = vunpack.c.h.b16 %v458
    %v620 = vunpack.c.l.b16 %v459
    %v621 = vunpack.c.l.b16 %v460
    %v622 = vunpack.c.h.b16 %v460
    %v623 = vunpack.c.l.b16 %v461
    %v624 = vunpack.c.l.b16 %v462
    %v625 = vunpack.c.h.b16 %v462
    %v626 = vunpack.c.l.b16 %v463
    %v627 = vunpack.c.l.b16 %v464
    %v628 = vunpack.c.h.b16 %v464
    %v629 = vunpack.c.l.b16 %v465
    %v630 = vunpack.c.l.b16 %v466
    %v631 = vunpack.c.h.b16 %v466
    %v632 = vunpack.c.l.b16 %v467
    %v633 = vunpack.c.l.b16 %v468
    %v634 = vunpack.c.h.b16 %v468
    %v635 = vunpack.c.l.b16 %v469
    %v636 = vunpack.c.l.b16 %v470
    %v637 = vunpack.c.h.b16 %v470
    %v638 = vunpack.c.l.b16 %v471
    %v639 = vunpack.c.l.b16 %v472
    %v640 = vunpack.c.h.b16 %v472
    %v641 = vunpack.c.l.b16 %v473
    %v642 = vpack.c.b16 %v549, %v546
    %v643 = vpack.c.b16 %v550, %v547
    %v644 = vpack.c.b16 %v551, %v548
    %v645 = vpack.c.b16 %v555, %v552
    %v646 = vpack.c.b16 %v556, %v553
    %v647 = vpack.c.b16 %v557, %v554
    %v648 = vpack.c.b16 %v561, %v558
    %v649 = vpack.c.b16 %v562, %v559
    %v650 = vpack.c.b16 %v563, %v560
    %v651 = vpack.c.b16 %v567, %v564
    %v652 = vpack.c.b16 %v568, %v565
    %v653 = vpack.c.b16 %v569, %v566
    %v654 = vpack.c.b16 %v573, %v570
    %v655 = vpack.c.b16 %v574, %v571
    %v656 = vpack.c.b16 %v575, %v572
    %v657 = vpack.c.b16 %v579, %v576
    %v658 = vpack.c.b16 %v580, %v577
    %v659 = vpack.c.b16 %v581, %v578
    %v660 = vpack.c.b16 %v585, %v582
    %v661 = vpack.c.b16 %v586, %v583
    %v662 = vpack.c.b16 %v587, %v584
    %v663 = vpack.c.b16 %v591, %v588
    %v664 = vpack.c.b16 %v592, %v589
    %v665 = vpack.c.b16 %v593, %v590
    %v666 = vpack.c.b16 %v597, %v594
    %v667 = vpack.c.b16 %v598, %v595
    %v668 = vpack.c.b16 %v599, %v596
    %v669 = vpack.c.b16 %v603, %v600
    %v670 = vpack.c.b16 %v604, %v601
    %v671 = vpack.c.b16 %v605, %v602
    %v672 = vpack.c.b16 %v609, %v606
    %v673 = vpack.c.b16 %v610, %v607
    %v674 = vpack.c.b16 %v611, %v608
    %v675 = vpack.c.b16 %v615, %v612
    %v676 = vpack.c.b16 %v616, %v613
    %v677 = vpack.c.b16 %v617, %v614
    %v678 = vpack.c.b16 %v621, %v618
    %v679 = vpack.c.b16 %v622, %v619
    %v680 = vpack.c.b16 %v623, %v620
    %v681 = vpack.c.b16 %v627, %v624
    %v682 = vpack.c.b16 %v628, %v625
    %v683 = vpack.c.b16 %v629, %v626
    %v684 = vpack.c.b16 %v633, %v630
    %v685 = vpack.c.b16 %v634, %v631
    %v686 = vpack.c.b16 %v635, %v632
    %v687 = vpack.c.b16 %v639, %v636
    %v688 = vpack.c.b16 %v640, %v637
    %v689 = vpack.c.b16 %v641, %v638
    %738 = vmatpush.bf16.msra.mxu0 %v663
    %739 = vmatpush.bf16.msra.mxu0 %v660
    %740 = vmatpush.bf16.msra.mxu0 %v657
    %741 = vmatpush.bf16.msra.mxu0 %v654
    %742 = vmatpush.bf16.msra.mxu0 %v651
    %743 = vmatpush.bf16.msra.mxu0 %v648
    %744 = vmatpush.bf16.msra.mxu0 %v645
    %745 = vmatpush.bf16.msra.mxu0 %v642
    %746 = vmatmul.bf16.gmra.mxu0 %v408
    %v747 = vpop.f32.mrf.mxu0
    %v748 = vadd.f32 %v476, %v747
    %v749 = vpop.f32.mrf.mxu0
    %750 = vdwg.mxu0
    %751 = vmatpush.bf16.msra.mxu0 %v687
    %752 = vmatpush.bf16.msra.mxu0 %v684
    %753 = vmatpush.bf16.msra.mxu0 %v681
    %754 = vmatpush.bf16.msra.mxu0 %v678
    %755 = vmatpush.bf16.msra.mxu0 %v675
    %756 = vmatpush.bf16.msra.mxu0 %v672
    %757 = vmatpush.bf16.msra.mxu0 %v669
    %758 = vmatpush.bf16.msra.mxu0 %v666
    %759 = vmatmul.bf16.gmra.mxu0 %v409
    %v760 = vpop.f32.mrf.mxu0
    %v761 = vadd.f32 %v748, %v760
    %v762 = vpop.f32.mrf.mxu0
    %763 = vdwg.mxu0
    %764 = vmatpush.bf16.msra.mxu0 %v664
    %765 = vmatpush.bf16.msra.mxu0 %v661
    %766 = vmatpush.bf16.msra.mxu0 %v658
    %767 = vmatpush.bf16.msra.mxu0 %v655
    %768 = vmatpush.bf16.msra.mxu0 %v652
    %769 = vmatpush.bf16.msra.mxu0 %v649
    %770 = vmatpush.bf16.msra.mxu0 %v646
    %771 = vmatpush.bf16.msra.mxu0 %v643
    %772 = vmatmul.bf16.gmra.mxu0 %v408
    %v773 = vpop.f32.mrf.mxu0
    %v774 = vadd.f32 %v477, %v773
    %v775 = vpop.f32.mrf.mxu0
    %776 = vdwg.mxu0
    %777 = vmatpush.bf16.msra.mxu0 %v688
    %778 = vmatpush.bf16.msra.mxu0 %v685
    %779 = vmatpush.bf16.msra.mxu0 %v682
    %780 = vmatpush.bf16.msra.mxu0 %v679
    %781 = vmatpush.bf16.msra.mxu0 %v676
    %782 = vmatpush.bf16.msra.mxu0 %v673
    %783 = vmatpush.bf16.msra.mxu0 %v670
    %784 = vmatpush.bf16.msra.mxu0 %v667
    %785 = vmatmul.bf16.gmra.mxu0 %v409
    %v786 = vpop.f32.mrf.mxu0
    %v787 = vadd.f32 %v774, %v786
    %v788 = vpop.f32.mrf.mxu0
    %789 = vdwg.mxu0
    %790 = vmatpush.bf16.msra.mxu0 %v665
    %791 = vmatpush.bf16.msra.mxu0 %v662
    %792 = vmatpush.bf16.msra.mxu0 %v659
    %793 = vmatpush.bf16.msra.mxu0 %v656
    %794 = vmatpush.bf16.msra.mxu0 %v653
    %795 = vmatpush.bf16.msra.mxu0 %v650
    %796 = vmatpush.bf16.msra.mxu0 %v647
    %797 = vmatpush.bf16.msra.mxu0 %v644
    %798 = vmatmul.bf16.gmra.mxu0 %v408
    %v799 = vpop.f32.mrf.mxu0
    %v800 = vadd.f32 %v478, %v799
    %v801 = vpop.f32.mrf.mxu0
    %802 = vdwg.mxu0
    %803 = vmatpush.bf16.msra.mxu0 %v689
    %804 = vmatpush.bf16.msra.mxu0 %v686
    %805 = vmatpush.bf16.msra.mxu0 %v683
    %806 = vmatpush.bf16.msra.mxu0 %v680
    %807 = vmatpush.bf16.msra.mxu0 %v677
    %808 = vmatpush.bf16.msra.mxu0 %v674
    %809 = vmatpush.bf16.msra.mxu0 %v671
    %810 = vmatpush.bf16.msra.mxu0 %v668
    %811 = vmatmul.bf16.gmra.mxu0 %v409
    %v812 = vpop.f32.mrf.mxu0
    %v813 = vadd.f32 %v800, %v812
    %v814 = vpop.f32.mrf.mxu0
    %815 = vdwg.mxu0
    %v816 = vmax.f32 %v761, 0.0
    %v817 = vmax.f32 %v787, 0.0
    %v818 = vmax.f32 %v813, 0.0
    %v819 = vpack.c.bf16 %v816, %v816
    %v820 = vpack.c.bf16 %v817, %v817
    %v821 = vpack.c.bf16 %v818, %v818
    %v822 = vld [vmem:[#allocation7] sm:$0xff]
    %v823 = vld [vmem:[#allocation7 + $0x8] sm:$0xff]
    %v824 = vld [vmem:[#allocation7 + $0x10] sm:$0xff]
    %v825 = vld [vmem:[#allocation7 + $0x18] sm:$0xff]
    %v826 = vld [vmem:[#allocation7 + $0x20] sm:$0xff]
    %v827 = vld [vmem:[#allocation7 + $0x28] sm:$0xff]
    %v828 = vld [vmem:[#allocation7 + $0x30] sm:$0xff]
    %v829 = vld [vmem:[#allocation7 + $0x38] sm:$0xff]
    %v830 = vld [vmem:[#allocation7 + $0x40] sm:$0xff]
    %v831 = vld [vmem:[#allocation7 + $0x48] sm:$0xff]
    %v832 = vld [vmem:[#allocation7 + $0x50] sm:$0xff]
    %v833 = vld [vmem:[#allocation7 + $0x58] sm:$0xff]
    %v834 = vld [vmem:[#allocation7 + $0x60] sm:$0xff]
    %v835 = vld [vmem:[#allocation7 + $0x68] sm:$0xff]
    %v836 = vld [vmem:[#allocation7 + $0x70] sm:$0xff]
    %v837 = vld [vmem:[#allocation7 + $0x78] sm:$0xff]
    %v838 = vld [vmem:[#allocation7 + $0x80] sm:$0xff]
    %v839 = vld [vmem:[#allocation7 + $0x88] sm:$0xff]
    %v840 = vld [vmem:[#allocation7 + $0x90] sm:$0xff]
    %v841 = vld [vmem:[#allocation7 + $0x98] sm:$0xff]
    %v842 = vld [vmem:[#allocation7 + $0xa0] sm:$0xff]
    %v843 = vld [vmem:[#allocation7 + $0xa8] sm:$0xff]
    %v844 = vld [vmem:[#allocation7 + $0xb0] sm:$0xff]
    %v845 = vld [vmem:[#allocation7 + $0xb8] sm:$0xff]
    %v846 = vld [vmem:[#allocation7 + $0xc0] sm:$0xff]
    %v847 = vld [vmem:[#allocation7 + $0xc8] sm:$0xff]
    %v848 = vld [vmem:[#allocation7 + $0xd0] sm:$0xff]
    %v849 = vld [vmem:[#allocation7 + $0xd8] sm:$0xff]
    %v850 = vld [vmem:[#allocation7 + $0xe0] sm:$0xff]
    %v851 = vld [vmem:[#allocation7 + $0xe8] sm:$0xff]
    %v852 = vld [vmem:[#allocation7 + $0xf0] sm:$0xff]
    %v853 = vld [vmem:[#allocation7 + $0xf8] sm:$0xff]
    %v854 = vld [vmem:[#allocation7 + $0x100] sm:$0xff]
    %v855 = vld [vmem:[#allocation7 + $0x108] sm:$0xff]
    %v856 = vld [vmem:[#allocation7 + $0x110] sm:$0xff]
    %v857 = vld [vmem:[#allocation7 + $0x118] sm:$0xff]
    %v858 = vld [vmem:[%s6] sm:$0x3]
    %v860 = vperm.slane %v858, 0
    %v861 = vperm.slane %v858, 1
    %v900 = vunpack.c.l.b16 %v822
    %v901 = vunpack.c.h.b16 %v822
    %v902 = vunpack.c.l.b16 %v823
    %v903 = vunpack.c.h.b16 %v823
    %v904 = vunpack.c.l.b16 %v824
    %v905 = vunpack.c.h.b16 %v824
    %v906 = vunpack.c.l.b16 %v825
    %v907 = vunpack.c.h.b16 %v825
    %v908 = vunpack.c.l.b16 %v826
    %v909 = vunpack.c.h.b16 %v826
    %v910 = vunpack.c.l.b16 %v827
    %v911 = vunpack.c.h.b16 %v827
    %v912 = vunpack.c.l.b16 %v828
    %v913 = vunpack.c.h.b16 %v828
    %v914 = vunpack.c.l.b16 %v829
    %v915 = vunpack.c.h.b16 %v829
    %v916 = vunpack.c.l.b16 %v830
    %v917 = vunpack.c.h.b16 %v830
    %v918 = vunpack.c.l.b16 %v831
    %v919 = vunpack.c.h.b16 %v831
    %v920 = vunpack.c.l.b16 %v832
    %v921 = vunpack.c.h.b16 %v832
    %v922 = vunpack.c.l.b16 %v833
    %v923 = vunpack.c.h.b16 %v833
    %v924 = vunpack.c.l.b16 %v834
    %v925 = vunpack.c.h.b16 %v834
    %v926 = vunpack.c.l.b16 %v835
    %v927 = vunpack.c.h.b16 %v835
    %v928 = vunpack.c.l.b16 %v836
    %v929 = vunpack.c.h.b16 %v836
    %v930 = vunpack.c.l.b16 %v837
    %v931 = vunpack.c.h.b16 %v837
    %v932 = vunpack.c.l.b16 %v838
    %v933 = vunpack.c.h.b16 %v838
    %v934 = vunpack.c.l.b16 %v839
    %v935 = vunpack.c.h.b16 %v839
    %v936 = vunpack.c.l.b16 %v840
    %v937 = vunpack.c.h.b16 %v840
    %v938 = vunpack.c.l.b16 %v841
    %v939 = vunpack.c.h.b16 %v841
    %v940 = vunpack.c.l.b16 %v842
    %v941 = vunpack.c.h.b16 %v842
    %v942 = vunpack.c.l.b16 %v843
    %v943 = vunpack.c.h.b16 %v843
    %v944 = vunpack.c.l.b16 %v844
    %v945 = vunpack.c.h.b16 %v844
    %v946 = vunpack.c.l.b16 %v845
    %v947 = vunpack.c.h.b16 %v845
    %v948 = vunpack.c.l.b16 %v846
    %v949 = vunpack.c.h.b16 %v846
    %v950 = vunpack.c.l.b16 %v847
    %v951 = vunpack.c.h.b16 %v847
    %v952 = vunpack.c.l.b16 %v848
    %v953 = vunpack.c.h.b16 %v848
    %v954 = vunpack.c.l.b16 %v849
    %v955 = vunpack.c.h.b16 %v849
    %v956 = vunpack.c.l.b16 %v850
    %v957 = vunpack.c.h.b16 %v850
    %v958 = vunpack.c.l.b16 %v851
    %v959 = vunpack.c.h.b16 %v851
    %v960 = vunpack.c.l.b16 %v852
    %v961 = vunpack.c.h.b16 %v852
    %v962 = vunpack.c.l.b16 %v853
    %v963 = vunpack.c.h.b16 %v853
    %v964 = vunpack.c.l.b16 %v854
    %v965 = vunpack.c.h.b16 %v854
    %v966 = vunpack.c.l.b16 %v855
    %v967 = vunpack.c.h.b16 %v855
    %v968 = vunpack.c.l.b16 %v856
    %v969 = vunpack.c.h.b16 %v856
    %v970 = vunpack.c.l.b16 %v857
    %v971 = vunpack.c.h.b16 %v857
    %v972 = vpack.c.b16 %v902, %v900
    %v973 = vpack.c.b16 %v903, %v901
    %v974 = vpack.c.b16 %v906, %v904
    %v975 = vpack.c.b16 %v907, %v905
    %v976 = vpack.c.b16 %v910, %v908
    %v977 = vpack.c.b16 %v911, %v909
    %v978 = vpack.c.b16 %v914, %v912
    %v979 = vpack.c.b16 %v915, %v913
    %v980 = vpack.c.b16 %v918, %v916
    %v981 = vpack.c.b16 %v919, %v917
    %v982 = vpack.c.b16 %v922, %v920
    %v983 = vpack.c.b16 %v923, %v921
    %v984 = vpack.c.b16 %v926, %v924
    %v985 = vpack.c.b16 %v927, %v925
    %v986 = vpack.c.b16 %v930, %v928
    %v987 = vpack.c.b16 %v931, %v929
    %v988 = vpack.c.b16 %v934, %v932
    %v989 = vpack.c.b16 %v935, %v933
    %v990 = vpack.c.b16 %v938, %v936
    %v991 = vpack.c.b16 %v939, %v937
    %v992 = vpack.c.b16 %v942, %v940
    %v993 = vpack.c.b16 %v943, %v941
    %v994 = vpack.c.b16 %v946, %v944
    %v995 = vpack.c.b16 %v947, %v945
    %v996 = vpack.c.b16 %v950, %v948
    %v997 = vpack.c.b16 %v951, %v949
    %v998 = vpack.c.b16 %v954, %v952
    %v999 = vpack.c.b16 %v955, %v953
    %v1000 = vpack.c.b16 %v958, %v956
    %v1001 = vpack.c.b16 %v959, %v957
    %v1002 = vpack.c.b16 %v962, %v960
    %v1003 = vpack.c.b16 %v963, %v961
    %v1004 = vpack.c.b16 %v966, %v964
    %v1005 = vpack.c.b16 %v967, %v965
    %v1006 = vpack.c.b16 %v970, %v968
    %v1007 = vpack.c.b16 %v971, %v969
    %vm1044 = vcmask 261120
    %v1046 = vsel %vm1044, %v821, 0
    %1048 = vmatpush.bf16.msra.mxu0 %v986
    %1049 = vmatpush.bf16.msra.mxu0 %v984
    %1050 = vmatpush.bf16.msra.mxu0 %v982
    %1051 = vmatpush.bf16.msra.mxu0 %v980
    %1052 = vmatpush.bf16.msra.mxu0 %v978
    %1053 = vmatpush.bf16.msra.mxu0 %v976
    %1054 = vmatpush.bf16.msra.mxu0 %v974
    %1055 = vmatpush.bf16.msra.mxu0 %v972
    %1056 = vmatmul.bf16.gmra.mxu0 %v819
    %v1057 = vpop.f32.mrf.mxu0
    %v1058 = vadd.f32 %v860, %v1057
    %v1059 = vpop.f32.mrf.mxu0
    %1060 = vdwg.mxu0
    %1061 = vmatpush.bf16.msra.mxu0 %v1002
    %1062 = vmatpush.bf16.msra.mxu0 %v1000
    %1063 = vmatpush.bf16.msra.mxu0 %v998
    %1064 = vmatpush.bf16.msra.mxu0 %v996
    %1065 = vmatpush.bf16.msra.mxu0 %v994
    %1066 = vmatpush.bf16.msra.mxu0 %v992
    %1067 = vmatpush.bf16.msra.mxu0 %v990
    %1068 = vmatpush.bf16.msra.mxu0 %v988
    %1069 = vmatmul.bf16.gmra.mxu0 %v820
    %v1070 = vpop.f32.mrf.mxu0
    %v1071 = vadd.f32 %v1058, %v1070
    %v1072 = vpop.f32.mrf.mxu0
    %1073 = vdwg.mxu0
    %1074 = vmatpush.bf16.msra.mxu0 0
    %1075 = vmatpush.bf16.msra.mxu0 0
    %1076 = vmatpush.bf16.msra.mxu0 0
    %1077 = vmatpush.bf16.msra.mxu0 0
    %1078 = vmatpush.bf16.msra.mxu0 0
    %1079 = vmatpush.bf16.msra.mxu0 0
    %1080 = vmatpush.bf16.msra.mxu0 %v1006
    %1081 = vmatpush.bf16.msra.mxu0 %v1004
    %1082 = vmatmul.bf16.gmra.mxu0 %v1046
    %v1083 = vpop.f32.mrf.mxu0
    %v1084 = vadd.f32 %v1071, %v1083
    %v1085 = vpop.f32.mrf.mxu0
    %1086 = vdwg.mxu0
    %1087 = vmatpush.bf16.msra.mxu0 %v987
    %1088 = vmatpush.bf16.msra.mxu0 %v985
    %1089 = vmatpush.bf16.msra.mxu0 %v983
    %1090 = vmatpush.bf16.msra.mxu0 %v981
    %1091 = vmatpush.bf16.msra.mxu0 %v979
    %1092 = vmatpush.bf16.msra.mxu0 %v977
    %1093 = vmatpush.bf16.msra.mxu0 %v975
    %1094 = vmatpush.bf16.msra.mxu0 %v973
    %1095 = vmatmul.bf16.gmra.mxu0 %v819
    %v1096 = vpop.f32.mrf.mxu0
    %v1097 = vadd.f32 %v861, %v1096
    %v1098 = vpop.f32.mrf.mxu0
    %1099 = vdwg.mxu0
    %1100 = vmatpush.bf16.msra.mxu0 %v1003
    %1101 = vmatpush.bf16.msra.mxu0 %v1001
    %1102 = vmatpush.bf16.msra.mxu0 %v999
    %1103 = vmatpush.bf16.msra.mxu0 %v997
    %1104 = vmatpush.bf16.msra.mxu0 %v995
    %1105 = vmatpush.bf16.msra.mxu0 %v993
    %1106 = vmatpush.bf16.msra.mxu0 %v991
    %1107 = vmatpush.bf16.msra.mxu0 %v989
    %1108 = vmatmul.bf16.gmra.mxu0 %v820
    %v1109 = vpop.f32.mrf.mxu0
    %v1110 = vadd.f32 %v1097, %v1109
    %v1111 = vpop.f32.mrf.mxu0
    %1112 = vdwg.mxu0
    %1113 = vmatpush.bf16.msra.mxu0 0
    %1114 = vmatpush.bf16.msra.mxu0 0
    %1115 = vmatpush.bf16.msra.mxu0 0
    %1116 = vmatpush.bf16.msra.mxu0 0
    %1117 = vmatpush.bf16.msra.mxu0 0
    %1118 = vmatpush.bf16.msra.mxu0 0
    %1119 = vmatpush.bf16.msra.mxu0 %v1007
    %1120 = vmatpush.bf16.msra.mxu0 %v1005
    %1121 = vmatmul.bf16.gmra.mxu0 %v1046
    %v1122 = vpop.f32.mrf.mxu0
    %v1123 = vadd.f32 %v1110, %v1122
    %v1124 = vpop.f32.mrf.mxu0
    %1125 = vdwg.mxu0
    %v1126 = vmax.f32 %v1084, 0.0
    %v1127 = vmax.f32 %v1123, 0.0
    %v1130 = vrot.slane %v1127, 6
    %vm1131 = vcmask 1041408
    %v1132 = vsel %vm1131, %v1126, %v1130
    %1134 = vst [vmem:[#allocation8] sm:$0xf] %v1132
    // Predicated region
    $region42: #{_lambda_.1} parent=1 // pred_check
      _
    $region43: #{_lambda_.1} parent=1 // pred_check_branch
      %1136 = sbr.rel (0) target = $region45
    $region44: #{_lambda_.1} parent=1 // pred_region
      %1138 = vsyncadd [#allocation4], 0
      %s1140 = sshll.u32 [#allocation8], 4
      %s1141 = int_to_ptr.vmem [resolvable:$true] %s1140
      %s1142 = sshll.u32 %s7, 4
      %s1143 = int_to_ptr.hbm [resolvable:$true] %s1142
      %1145 = dma.vmem_to_hbm [thread:$0]  %s1141, 64, %s1143, [#allocation4]
    $region45: #{_lambda_.1} parent=1 // pred_fallthru
      _
    // Predicated region
    $region46: #{_lambda_.1} parent=1 // pred_check
      _
    $region47: #{_lambda_.1} parent=1 // pred_check_branch
      %1147 = sbr.rel (0) target = $region49
    $region48: #{_lambda_.1} parent=1 // pred_region
      %1149 = dma.done [#allocation4], 64
    $region49: #{_lambda_.1} parent=1 // pred_fallthru
      _
    %1150 = vsyncpa [#allocation3], 1
    %1151 = vsyncpa [#allocation6], 1
    %1152 = vsyncpa [#allocation4], 1

</llo_original>
